<compile_context>
chip_gen: v6e
topology: v6e:2x2x1
jax: 0.10.0
libtpu: 0.0.40
codegen_flags: <defaults>
</compile_context>

<pallas_src>
import functools

import jax
import jax.numpy as jnp
from jax.experimental import pallas as pl
from jax.experimental.pallas import tpu as pltpu


def _round_up(x, m):
    return (x + m - 1) // m * m


def _head_kernel(x_ref, w1_ref, b1_ref, g_ref, bt_ref, w2_ref, b2_ref,
                 o_ref, t_ref, *, eps):
    """One (M-tile, V-tile) grid step of BertLMPredictionHead.

    x_ref  : (tm, H)   bf16 hidden-states tile
    w1_ref : (H, H)    bf16 transform dense weight, (in, out) layout
    b1_ref : (1, H)    f32 transform dense bias
    g_ref  : (1, H)    f32 layernorm gamma
    bt_ref : (1, H)    f32 layernorm beta
    w2_ref : (H, tv)   bf16 decoder weight tile, (in, out) layout
    b2_ref : (1, tv)   f32 decoder bias tile
    o_ref  : (tm, tv)  logits tile
    t_ref  : (tm, H)   bf16 VMEM scratch: transformed hidden states
    """
    # Transform (dense + gelu + layernorm) once per M tile, on the first V tile;
    # cached in VMEM scratch and reused for every vocab tile.
    @pl.when(pl.program_id(1) == 0)
    def _():
        h = jnp.dot(x_ref[...], w1_ref[...],
                    preferred_element_type=jnp.float32)
        h = h + b1_ref[...]
        # TODO(synk): HF ACT2FN["gelu"] is the exact erf GELU; tanh-approx used
        # here (Mosaic erf lowering is version-dependent).  Max abs dev ~1e-3.
        h = jax.nn.gelu(h, approximate=True)
        # One-pass layernorm statistics: var = E[h^2] - mean^2.
        mu = jnp.mean(h, axis=-1, keepdims=True)
        m2 = jnp.mean(h * h, axis=-1, keepdims=True)
        var = m2 - mu * mu
        h = (h - mu) * jax.lax.rsqrt(var + eps)
        h = h * g_ref[...] + bt_ref[...]
        t_ref[...] = h.astype(t_ref.dtype)          # cast to bf16 exactly once

    logits = jnp.dot(t_ref[...], w2_ref[...],
                     preferred_element_type=jnp.float32)
    o_ref[...] = (logits + b2_ref[...]).astype(o_ref.dtype)


@functools.partial(jax.jit,
                   static_argnames=("eps", "tm", "tv", "min_m_tiles"))
def _bert_lm_head_2d(x2d, w1, b1, gamma, beta, w2, b2, *,
                     eps, tm, tv, min_m_tiles):
    """x2d: (M, H) -> logits (M, V) via a single fused pallas_call."""
    M, H = x2d.shape
    V = w2.shape[1]
    out_dtype = x2d.dtype

    # bf16 MXU operands; all accumulation stays f32 inside the kernel.
    xb = x2d.astype(jnp.bfloat16)
    w1b = w1.astype(jnp.bfloat16)
    w2b = w2.astype(jnp.bfloat16)
    b1_2d = b1.reshape(1, H).astype(jnp.float32)
    g_2d = gamma.reshape(1, H).astype(jnp.float32)
    bt_2d = beta.reshape(1, H).astype(jnp.float32)
    b2_2d = b2.reshape(1, V).astype(jnp.float32)

    # M tile: multiple of 8, optionally capped so there are >= min_m_tiles
    # blocks (set min_m_tiles=2 on v7x so both TensorCores get work).
    tm_eff = max(8, min(tm, _round_up(pl.cdiv(M, max(min_m_tiles, 1)), 8)))
    # V tile: always lane-dense (multiple of 128).  The ragged last block
    # (e.g. V=30522) is masked by Pallas -- never load the whole (H, V) weight.
    tv_eff = min(tv, _round_up(V, 128))

    grid = (pl.cdiv(M, tm_eff), pl.cdiv(V, tv_eff))
    num_m_tiles = grid[0]
    out_isz = jnp.dtype(out_dtype).itemsize

    cost = pl.CostEstimate(
        flops=2 * M * H * H + 2 * M * H * V,
        transcendentals=M * H,                        # one tanh per element
        bytes_accessed=(
            M * H * 2                                 # x (bf16)
            + H * H * 2                               # w1 (bf16, resident)
            + 3 * H * 4                               # b1 / gamma / beta (f32)
            + num_m_tiles * (H * V * 2 + V * 4)       # w2 + b2 restreamed / M tile
            + M * V * out_isz                         # logits
        ),
    )

    # VMEM budget: double-buffered x / w1 / small vecs / w2 / b2 / out + scratch.
    # TODO(synk): pipeline_mode=pl.Buffered(1) on the constant-index inputs
    # (w1/b1/gamma/beta) would drop one w1 buffer; left off for lowering compat.
    vmem_est = (
        2 * tm_eff * H * 2              # x tile (bf16)
        + 2 * H * H * 2                 # w1 (bf16)
        + 2 * 3 * H * 4                 # b1 / gamma / beta
        + 2 * H * tv_eff * 2            # w2 tile (bf16)
        + 2 * tv_eff * 4                # b2 tile
        + 2 * tm_eff * tv_eff * out_isz  # out tile
        + tm_eff * H * 2                # transform scratch (bf16)
    )
    vmem_limit = min(max(int(vmem_est * 1.25) + (2 << 20), 16 << 20), 64 << 20)

    out = pl.pallas_call(
        functools.partial(_head_kernel, eps=eps),
        out_shape=jax.ShapeDtypeStruct((M, V), out_dtype),
        grid_spec=pltpu.PrefetchScalarGridSpec(
            num_scalar_prefetch=0,
            grid=grid,
            in_specs=[
                pl.BlockSpec((tm_eff, H), lambda i, v: (i, 0)),   # x
                pl.BlockSpec((H, H), lambda i, v: (0, 0)),        # w1 (resident)
                pl.BlockSpec((1, H), lambda i, v: (0, 0)),        # b1
                pl.BlockSpec((1, H), lambda i, v: (0, 0)),        # gamma
                pl.BlockSpec((1, H), lambda i, v: (0, 0)),        # beta
                pl.BlockSpec((H, tv_eff), lambda i, v: (0, v)),   # w2 tile
                pl.BlockSpec((1, tv_eff), lambda i, v: (0, v)),   # b2 tile
            ],
            out_specs=pl.BlockSpec((tm_eff, tv_eff), lambda i, v: (i, v)),
            scratch_shapes=[pltpu.VMEM((tm_eff, H), jnp.bfloat16)],
        ),
        compiler_params=pltpu.CompilerParams(
            dimension_semantics=("parallel", "arbitrary"),
            vmem_limit_bytes=vmem_limit),
        cost_estimate=cost,
    )(xb, w1b, b1_2d, g_2d, bt_2d, w2b, b2_2d)

    return out


def bert_lm_prediction_head_forward(hidden_states, dense_weight, dense_bias,
                                     ln_gamma, ln_beta, decoder_weight,
                                     decoder_bias, *, layer_norm_eps=1e-12,
                                     tm=512, tv=512, min_m_tiles=1):
    """Forward pass matching BertLMPredictionHead.

    Args:
      hidden_states:  (..., H) float (e.g. (B, S, H)).
      dense_weight:   (H, H)  transform dense weight in (in, out) layout
                      (i.e. PyTorch `transform.dense.weight.T`).
      dense_bias:     (H,)
      ln_gamma:       (H,)   layernorm weight
      ln_beta:        (H,)   layernorm bias
      decoder_weight: (H, V) decoder weight in (in, out) layout
                      (i.e. PyTorch `decoder.weight.T`).
      decoder_bias:   (V,)
      layer_norm_eps: layernorm epsilon.
      tm, tv:         M / vocab tile sizes.  Defaults (512, 512) fit all
                      generations; v6e (128 MiB VMEM) can go to tm/tv ~ 1024.
      min_m_tiles:    set to 2 on v7x so both TensorCores get M tiles.

    Returns:
      logits of shape (..., V), in hidden_states.dtype.
    """
    H = hidden_states.shape[-1]
    V = decoder_weight.shape[1]
    lead = hidden_states.shape[:-1]
    x2d = hidden_states.reshape(-1, H)
    out = _bert_lm_head_2d(x2d, dense_weight, dense_bias, ln_gamma, ln_beta,
                           decoder_weight, decoder_bias,
                           eps=float(layer_norm_eps), tm=tm, tv=tv,
                           min_m_tiles=min_m_tiles)
    return out.reshape(*lead, V)


def _reference_forward(x2d, w1, b1, gamma, beta, w2, b2, eps):
    """Pure-JAX reference mirroring the kernel's bf16-matmul / f32-accumulate path."""
    h = jnp.dot(x2d.astype(jnp.bfloat16), w1.astype(jnp.bfloat16),
                preferred_element_type=jnp.float32) + b1
    h = jax.nn.gelu(h, approximate=True)
    mu = jnp.mean(h, axis=-1, keepdims=True)
    var = jnp.mean(jnp.square(h - mu), axis=-1, keepdims=True)
    h = (h - mu) * jax.lax.rsqrt(var + eps)
    h = h * gamma + beta
    return jnp.dot(h.astype(jnp.bfloat16), w2.astype(jnp.bfloat16),
                   preferred_element_type=jnp.float32) + b2


if __name__ == "__main__":
    # Small config: batch=2, seq=24, hidden=32, vocab=400.
    # V is deliberately NOT a multiple of 128 to exercise the masked ragged
    # last vocab block (the path that previously fell back to loading the
    # full decoder weight).
    B, S, H, V = 2, 24, 32, 400
    eps = 1e-12

    key = jax.random.PRNGKey(0)
    kx, kw1, kb1, kg, kbt, kw2, kb2 = jax.random.split(key, 7)
    x = jax.random.normal(kx, (B, S, H), dtype=jnp.float32)
    w1 = jax.random.normal(kw1, (H, H), dtype=jnp.float32) / jnp.sqrt(H)
    b1 = 0.02 * jax.random.normal(kb1, (H,), dtype=jnp.float32)
    gamma = 1.0 + 0.1 * jax.random.normal(kg, (H,), dtype=jnp.float32)
    beta = 0.02 * jax.random.normal(kbt, (H,), dtype=jnp.float32)
    w2 = jax.random.normal(kw2, (H, V), dtype=jnp.float32) / jnp.sqrt(H)
    b2 = 0.02 * jax.random.normal(kb2, (V,), dtype=jnp.float32)

    # Small tiles so the multi-tile grid (3 M-tiles x 4 V-tiles, last V block
    # ragged) and the VMEM scratch reuse across V-tiles are actually exercised.
    out = bert_lm_prediction_head_forward(
        x, w1, b1, gamma, beta, w2, b2,
        layer_norm_eps=eps, tm=16, tv=128)
    out = jax.block_until_ready(out)

    ref = _reference_forward(x.reshape(-1, H), w1, b1, gamma, beta, w2, b2,
                             eps).reshape(B, S, V)
    assert out.shape == (B, S, V)
    assert out.dtype == x.dtype
    assert jnp.allclose(out, ref, atol=2e-2, rtol=2e-2), "mismatch vs reference"

    print("KERNEL_OK")
</pallas_src>

<mosaic_0001>
module attributes {stable_mosaic.version = 11 : i64} {
  func.func @_head_kernel(%arg0: i32, %arg1: i32, %arg2: memref<16x32xbf16, #tpu.memory_space<vmem>>, %arg3: memref<32x32xbf16, #tpu.memory_space<vmem>>, %arg4: memref<1x32xf32, #tpu.memory_space<vmem>>, %arg5: memref<1x32xf32, #tpu.memory_space<vmem>>, %arg6: memref<1x32xf32, #tpu.memory_space<vmem>>, %arg7: memref<32x128xbf16, #tpu.memory_space<vmem>>, %arg8: memref<1x128xf32, #tpu.memory_space<vmem>>, %arg9: memref<16x128xf32, #tpu.memory_space<vmem>>, %arg10: memref<16x32xbf16, #tpu.memory_space<vmem>>) attributes {dimension_semantics = [#tpu.dimension_semantics<parallel>, #tpu.dimension_semantics<arbitrary>], iteration_bounds = array<i64: 3, 4>, scalar_prefetch = 0 : i64, scratch_operands = 1 : i64, tpu.core_type = #tpu.core_type<tc>, window_params = [{transform_indices = @transform_0, window_bounds = array<i64: 16, 32>}, {pipeline_mode = #tpu.pipeline_mode<synchronous>, transform_indices = @transform_1, window_bounds = array<i64: 32, 32>}, {pipeline_mode = #tpu.pipeline_mode<synchronous>, transform_indices = @transform_2, window_bounds = array<i64: 1, 32>}, {pipeline_mode = #tpu.pipeline_mode<synchronous>, transform_indices = @transform_3, window_bounds = array<i64: 1, 32>}, {pipeline_mode = #tpu.pipeline_mode<synchronous>, transform_indices = @transform_4, window_bounds = array<i64: 1, 32>}, {transform_indices = @transform_5, window_bounds = array<i64: 32, 128>}, {transform_indices = @transform_6, window_bounds = array<i64: 1, 128>}, {transform_indices = @transform_7, window_bounds = array<i64: 16, 128>}]} {
    %c0_i32 = arith.constant 0 : i32
    %0 = arith.cmpi eq, %arg1, %c0_i32 : i32
    %1 = arith.extui %0 : i1 to i32
    %c0_i32_0 = arith.constant 0 : i32
    %2 = arith.cmpi ne, %1, %c0_i32_0 : i32
    scf.if %2 {
      %c0_8 = arith.constant 0 : index
      %c0_9 = arith.constant 0 : index
      %10 = vector.load %arg2[%c0_8, %c0_9] : memref<16x32xbf16, #tpu.memory_space<vmem>>, vector<16x32xbf16>
      %c0_10 = arith.constant 0 : index
      %c0_11 = arith.constant 0 : index
      %11 = vector.load %arg3[%c0_10, %c0_11] : memref<32x32xbf16, #tpu.memory_space<vmem>>, vector<32x32xbf16>
      %cst_12 = arith.constant dense<0.000000e+00> : vector<16x32xf32>
      %12 = tpu.matmul %10, %11, %cst_12 {dimension_numbers = #tpu.dot_dimension_numbers<[1], [0], [0], [1], [0, 0, 1, 1], [], []>} : vector<16x32xbf16>, vector<32x32xbf16>, vector<16x32xf32> -> vector<16x32xf32>
      %c0_13 = arith.constant 0 : index
      %c0_14 = arith.constant 0 : index
      %13 = vector.load %arg4[%c0_13, %c0_14] : memref<1x32xf32, #tpu.memory_space<vmem>>, vector<1x32xf32>
      %14 = vector.broadcast %13 : vector<1x32xf32> to vector<16x32xf32>
      %15 = arith.addf %12, %14 : vector<16x32xf32>
      %16 = arith.mulf %15, %15 : vector<16x32xf32>
      %17 = arith.mulf %15, %16 : vector<16x32xf32>
      %cst_15 = arith.constant 4.471500e-02 : f32
      %18 = vector.broadcast %cst_15 : f32 to vector<16x32xf32>
      %19 = arith.mulf %18, %17 : vector<16x32xf32>
      %20 = arith.addf %15, %19 : vector<16x32xf32>
      %cst_16 = arith.constant 0.797884583 : f32
      %21 = vector.broadcast %cst_16 : f32 to vector<16x32xf32>
      %22 = arith.mulf %21, %20 : vector<16x32xf32>
      %23 = math.tanh %22 : vector<16x32xf32>
      %cst_17 = arith.constant 1.000000e+00 : f32
      %24 = vector.broadcast %cst_17 : f32 to vector<16x32xf32>
      %25 = arith.addf %24, %23 : vector<16x32xf32>
      %cst_18 = arith.constant 5.000000e-01 : f32
      %26 = vector.broadcast %cst_18 : f32 to vector<16x32xf32>
      %27 = arith.mulf %26, %25 : vector<16x32xf32>
      %28 = arith.mulf %15, %27 : vector<16x32xf32>
      %cst_19 = arith.constant dense<0.000000e+00> : vector<16xf32>
      %29 = vector.multi_reduction <add>, %28, %cst_19 [1] : vector<16x32xf32> to vector<16xf32>
      %30 = vector.shape_cast %29 : vector<16xf32> to vector<16x1xf32>
      %cst_20 = arith.constant 3.200000e+01 : f32
      %31 = vector.broadcast %cst_20 : f32 to vector<16x1xf32>
      %32 = arith.divf %30, %31 : vector<16x1xf32>
      %33 = arith.mulf %28, %28 : vector<16x32xf32>
      %cst_21 = arith.constant dense<0.000000e+00> : vector<16xf32>
      %34 = vector.multi_reduction <add>, %33, %cst_21 [1] : vector<16x32xf32> to vector<16xf32>
      %35 = vector.shape_cast %34 : vector<16xf32> to vector<16x1xf32>
      %cst_22 = arith.constant 3.200000e+01 : f32
      %36 = vector.broadcast %cst_22 : f32 to vector<16x1xf32>
      %37 = arith.divf %35, %36 : vector<16x1xf32>
      %38 = arith.mulf %32, %32 : vector<16x1xf32>
      %39 = arith.subf %37, %38 : vector<16x1xf32>
      %40 = vector.broadcast %32 : vector<16x1xf32> to vector<16x32xf32>
      %41 = arith.subf %28, %40 : vector<16x32xf32>
      %cst_23 = arith.constant 9.99999996E-13 : f32
      %42 = vector.broadcast %cst_23 : f32 to vector<16x1xf32>
      %43 = arith.addf %39, %42 : vector<16x1xf32>
      %44 = math.rsqrt %43 : vector<16x1xf32>
      %45 = vector.broadcast %44 : vector<16x1xf32> to vector<16x32xf32>
      %46 = arith.mulf %41, %45 : vector<16x32xf32>
      %c0_24 = arith.constant 0 : index
      %c0_25 = arith.constant 0 : index
      %47 = vector.load %arg5[%c0_24, %c0_25] : memref<1x32xf32, #tpu.memory_space<vmem>>, vector<1x32xf32>
      %48 = vector.broadcast %47 : vector<1x32xf32> to vector<16x32xf32>
      %49 = arith.mulf %46, %48 : vector<16x32xf32>
      %c0_26 = arith.constant 0 : index
      %c0_27 = arith.constant 0 : index
      %50 = vector.load %arg6[%c0_26, %c0_27] : memref<1x32xf32, #tpu.memory_space<vmem>>, vector<1x32xf32>
      %51 = vector.broadcast %50 : vector<1x32xf32> to vector<16x32xf32>
      %52 = arith.addf %49, %51 : vector<16x32xf32>
      %53 = arith.truncf %52 : vector<16x32xf32> to vector<16x32xbf16>
      %c0_28 = arith.constant 0 : index
      %c0_29 = arith.constant 0 : index
      %54 = vector.load %arg10[%c0_28, %c0_29] : memref<16x32xbf16, #tpu.memory_space<vmem>>, vector<16x32xbf16>
      tpu.vector_store %arg10[%c0_28, %c0_29], %53 {strides = array<i32>} : memref<16x32xbf16, #tpu.memory_space<vmem>>, vector<16x32xbf16>,
    } else {
    }
    %c0 = arith.constant 0 : index
    %c0_1 = arith.constant 0 : index
    %3 = vector.load %arg10[%c0, %c0_1] : memref<16x32xbf16, #tpu.memory_space<vmem>>, vector<16x32xbf16>
    %c0_2 = arith.constant 0 : index
    %c0_3 = arith.constant 0 : index
    %4 = vector.load %arg7[%c0_2, %c0_3] : memref<32x128xbf16, #tpu.memory_space<vmem>>, vector<32x128xbf16>
    %cst = arith.constant dense<0.000000e+00> : vector<16x128xf32>
    %5 = tpu.matmul %3, %4, %cst {dimension_numbers = #tpu.dot_dimension_numbers<[1], [0], [0], [1], [0, 0, 1, 1], [], []>} : vector<16x32xbf16>, vector<32x128xbf16>, vector<16x128xf32> -> vector<16x128xf32>
    %c0_4 = arith.constant 0 : index
    %c0_5 = arith.constant 0 : index
    %6 = vector.load %arg8[%c0_4, %c0_5] : memref<1x128xf32, #tpu.memory_space<vmem>>, vector<1x128xf32>
    %7 = vector.broadcast %6 : vector<1x128xf32> to vector<16x128xf32>
    %8 = arith.addf %5, %7 : vector<16x128xf32>
    %c0_6 = arith.constant 0 : index
    %c0_7 = arith.constant 0 : index
    %9 = vector.load %arg9[%c0_6, %c0_7] : memref<16x128xf32, #tpu.memory_space<vmem>>, vector<16x128xf32>
    tpu.vector_store %arg9[%c0_6, %c0_7], %8 {strides = array<i32>} : memref<16x128xf32, #tpu.memory_space<vmem>>, vector<16x128xf32>,
    return
  }
  func.func @transform_0(%arg0: i32, %arg1: i32) -> (i32, i32) {
    %c0_i32 = arith.constant 0 : i32
    %c0_i32_0 = arith.constant 0 : i32
    return %arg0, %c0_i32 : i32, i32
  }
  func.func @transform_1(%arg0: i32, %arg1: i32) -> (i32, i32) {
    %c0_i32 = arith.constant 0 : i32
    %c0_i32_0 = arith.constant 0 : i32
    %c0_i32_1 = arith.constant 0 : i32
    return %c0_i32, %c0_i32_0 : i32, i32
  }
  func.func @transform_2(%arg0: i32, %arg1: i32) -> (i32, i32) {
    %c0_i32 = arith.constant 0 : i32
    %c0_i32_0 = arith.constant 0 : i32
    %c0_i32_1 = arith.constant 0 : i32
    return %c0_i32, %c0_i32_0 : i32, i32
  }
  func.func @transform_3(%arg0: i32, %arg1: i32) -> (i32, i32) {
    %c0_i32 = arith.constant 0 : i32
    %c0_i32_0 = arith.constant 0 : i32
    %c0_i32_1 = arith.constant 0 : i32
    return %c0_i32, %c0_i32_0 : i32, i32
  }
  func.func @transform_4(%arg0: i32, %arg1: i32) -> (i32, i32) {
    %c0_i32 = arith.constant 0 : i32
    %c0_i32_0 = arith.constant 0 : i32
    %c0_i32_1 = arith.constant 0 : i32
    return %c0_i32, %c0_i32_0 : i32, i32
  }
  func.func @transform_5(%arg0: i32, %arg1: i32) -> (i32, i32) {
    %c0_i32 = arith.constant 0 : i32
    %c0_i32_0 = arith.constant 0 : i32
    return %c0_i32, %arg1 : i32, i32
  }
  func.func @transform_6(%arg0: i32, %arg1: i32) -> (i32, i32) {
    %c0_i32 = arith.constant 0 : i32
    %c0_i32_0 = arith.constant 0 : i32
    return %c0_i32, %arg1 : i32, i32
  }
  func.func @transform_7(%arg0: i32, %arg1: i32) -> (i32, i32) {
    %c0_i32 = arith.constant 0 : i32
    return %arg0, %arg1 : i32, i32
  }
}

</mosaic_0001>

<llo_original>
// kernel: _bert_lm_head_2d.1
$region0: #{_bert_lm_head_2d.1}
  #allocation0 [shape = 'u32[]', space=smem, size = 0x4, offset = 0x4, fixed_abs, tag = 'smem constant byte address 0x4 - core index']
  #allocation1 [shape = 'u32[144,128]{1,0:T(1,128)}', space=vmem, size = 0x12000, scoped, tag = 'internal scratch']
  #allocation2 [shape = 'bf16[16,32]{1,0:T(8,128)(2,1)}', space=vmem, size = 0x1000, scoped, tag = 'scratch operand']
  %s0 = inlined_call_operand.vmem [shape: bf16[48,32], index: 0, kind: input, shape index: {}]
  %s1 = inlined_call_operand.vmem [shape: bf16[32,32], index: 1, kind: input, shape index: {}]
  %s2 = inlined_call_operand.vmem [shape: f32[1,32], index: 2, kind: input, shape index: {}]
  %s3 = inlined_call_operand.vmem [shape: f32[1,32], index: 3, kind: input, shape index: {}]
  %s4 = inlined_call_operand.vmem [shape: f32[1,32], index: 4, kind: input, shape index: {}]
  %s5 = inlined_call_operand.vmem [shape: bf16[32,400], index: 5, kind: input, shape index: {}]
  %s6 = inlined_call_operand.vmem [shape: f32[1,400], index: 6, kind: input, shape index: {}]
  %s7 = inlined_call_operand.hbm [shape: f32[48,400], index: 7, kind: output, shape index: {}]
  %s8 = sld [smem:[#allocation0]]
  $region106: #{_bert_lm_head_2d.1} parent=0
    _
  %s10 = ssub.s32 1, %s8
  %s11 = scalar_select 0, %s10, %s8
  $region1: #{_bert_lm_head_2d.1} parent=0
    #allocation3 [shape = 'u8[16384]{0}', space=vmem, size = 0x4000, scoped, tag = 'input window, operand 5']
    #allocation4 [shape = 'u8[16384]{0}', space=vmem, size = 0x4000, scoped, tag = 'output window, operand 0']
    #allocation5 [shape = 's32[2]{0}', space=sflag, size = 0x8, scoped, tag = 'scoped memory for _bert_lm_head_2d.1']
    %12 = vsyncpa [#allocation5], 0
    %s13 = scalar_lea.sflag [#allocation5], 1
    %14 = vsyncpa %s13, 0
    loop: start=0, step=1, limit=14
    $region2: #{_bert_lm_head_2d.1} parent=1 // loop_pre_header
      _
    $region3: #{_bert_lm_head_2d.1} parent=1 // loop_header
      %s16 = sphi 0, %s20
      %p17 = scmp.ge.s32.totalorder %s16, 14
      %s23 = sphi 0, %s35
      %s24 = sphi 0, %s31
      %s25 = sphi 0, %s23
      %s26 = sphi 0, %s24
      %s27 = sphi 0, %s25
      %s28 = sphi 0, %s26
      %s38 = sphi 0, %s40
      %s41 = sphi 0, %s38
      %s42 = sphi 0, %s41
      %s58 = sphi 0, %s42
      %s62 = sphi 0, %s62
      %s64 = sphi 0, %s62
      %s65 = sphi 0, %s64
      %s79 = sphi 0, %s65
      %s83 = sphi 0, %s83
      %s85 = sphi 0, %s83
      %s86 = sphi 0, %s85
      %s100 = sphi 0, %s86
      %s104 = sphi 0, %s104
      %s106 = sphi 0, %s104
      %s107 = sphi 0, %s106
      %s121 = sphi 0, %s107
      %s125 = sphi 0, %s125
      %s127 = sphi 0, %s125
      %s128 = sphi 0, %s127
      %s142 = sphi 0, %s128
      %s148 = sphi 0, %s150
      %s151 = sphi 0, %s148
      %s152 = sphi 0, %s151
      %s168 = sphi 0, %s152
      %s174 = sphi 0, %s176
      %s177 = sphi 0, %s174
      %s178 = sphi 0, %s177
      %s194 = sphi 0, %s178
      %s202 = sphi 0, %s204
      %s205 = sphi 0, %s202
      %s206 = sphi 0, %s205
      %s222 = sphi 0, %s206
    $region4: #{_bert_lm_head_2d.1} parent=1 // loop_header_branch
      %19 = sbr.rel (%p17) target = $region8
    $region5: #{_bert_lm_head_2d.1} parent=1 // loop_body
      %s21 = ssub.s32 %s16, 1
      %s22 = ssub.s32 %s16, 2
      %s29 = sadd.s32 1, %s24
      %p30 = scmp.ge.s32.totalorder %s29, 4
      %s31 = scalar_select %p30, 0, %s29
      %s32 = sadd.s32 1, %s23
      %s33 = scalar_select %p30, %s32, %s23
      %p34 = scmp.ge.s32.totalorder %s33, 3
      %s35 = scalar_select %p34, 0, %s33
      %s36 = ssub.s32 %s23, %s35
      %p37 = scmp.eq.s32.totalorder %s36, 0
      %s39 = sadd.s32 %s38, 1
      %s40 = scalar_select %p37, %s38, %s39
      %p43 = pneg %p37
      %p44 = scmp.eq.s32.totalorder %s16, 11
      %p45 = por %p43, %p44
      %p46 = scmp.ne.s32.totalorder %s38, %s41
      %p47 = scmp.eq.s32.totalorder %s16, 0
      %p48 = por %p46, %p47
      %p49 = scmp.ne.s32.totalorder %s38, %s41
      %p50 = scmp.eq.s32.totalorder %s21, 11
      %p51 = por %p49, %p50
      %p52 = scmp.ne.s32.totalorder %s41, %s42
      %p53 = scmp.eq.s32.totalorder %s21, 0
      %p54 = por %p52, %p53
      %p55 = scmp.ne.s32.totalorder %s41, %s42
      %p56 = scmp.eq.s32.totalorder %s22, 11
      %p57 = por %p55, %p56
      %p59 = scmp.ne.s32.totalorder %s42, %s58
      %p60 = scmp.eq.s32.totalorder %s22, 0
      %p61 = por %p59, %p60
      %s63 = sadd.s32 %s62, 1
      %p66 = scmp.eq.s32.totalorder %s16, 11
      %p67 = scmp.ne.s32.totalorder %s62, %s64
      %p68 = scmp.eq.s32.totalorder %s16, 0
      %p69 = por %p67, %p68
      %p70 = scmp.ne.s32.totalorder %s62, %s64
      %p71 = scmp.eq.s32.totalorder %s21, 11
      %p72 = por %p70, %p71
      %p73 = scmp.ne.s32.totalorder %s64, %s65
      %p74 = scmp.eq.s32.totalorder %s21, 0
      %p75 = por %p73, %p74
      %p76 = scmp.ne.s32.totalorder %s64, %s65
      %p77 = scmp.eq.s32.totalorder %s22, 11
      %p78 = por %p76, %p77
      %p80 = scmp.ne.s32.totalorder %s65, %s79
      %p81 = scmp.eq.s32.totalorder %s22, 0
      %p82 = por %p80, %p81
      %s84 = sadd.s32 %s83, 1
      %p87 = scmp.eq.s32.totalorder %s16, 11
      %p88 = scmp.ne.s32.totalorder %s83, %s85
      %p89 = scmp.eq.s32.totalorder %s16, 0
      %p90 = por %p88, %p89
      %p91 = scmp.ne.s32.totalorder %s83, %s85
      %p92 = scmp.eq.s32.totalorder %s21, 11
      %p93 = por %p91, %p92
      %p94 = scmp.ne.s32.totalorder %s85, %s86
      %p95 = scmp.eq.s32.totalorder %s21, 0
      %p96 = por %p94, %p95
      %p97 = scmp.ne.s32.totalorder %s85, %s86
      %p98 = scmp.eq.s32.totalorder %s22, 11
      %p99 = por %p97, %p98
      %p101 = scmp.ne.s32.totalorder %s86, %s100
      %p102 = scmp.eq.s32.totalorder %s22, 0
      %p103 = por %p101, %p102
      %s105 = sadd.s32 %s104, 1
      %p108 = scmp.eq.s32.totalorder %s16, 11
      %p109 = scmp.ne.s32.totalorder %s104, %s106
      %p110 = scmp.eq.s32.totalorder %s16, 0
      %p111 = por %p109, %p110
      %p112 = scmp.ne.s32.totalorder %s104, %s106
      %p113 = scmp.eq.s32.totalorder %s21, 11
      %p114 = por %p112, %p113
      %p115 = scmp.ne.s32.totalorder %s106, %s107
      %p116 = scmp.eq.s32.totalorder %s21, 0
      %p117 = por %p115, %p116
      %p118 = scmp.ne.s32.totalorder %s106, %s107
      %p119 = scmp.eq.s32.totalorder %s22, 11
      %p120 = por %p118, %p119
      %p122 = scmp.ne.s32.totalorder %s107, %s121
      %p123 = scmp.eq.s32.totalorder %s22, 0
      %p124 = por %p122, %p123
      %s126 = sadd.s32 %s125, 1
      %p129 = scmp.eq.s32.totalorder %s16, 11
      %p130 = scmp.ne.s32.totalorder %s125, %s127
      %p131 = scmp.eq.s32.totalorder %s16, 0
      %p132 = por %p130, %p131
      %p133 = scmp.ne.s32.totalorder %s125, %s127
      %p134 = scmp.eq.s32.totalorder %s21, 11
      %p135 = por %p133, %p134
      %p136 = scmp.ne.s32.totalorder %s127, %s128
      %p137 = scmp.eq.s32.totalorder %s21, 0
      %p138 = por %p136, %p137
      %p139 = scmp.ne.s32.totalorder %s127, %s128
      %p140 = scmp.eq.s32.totalorder %s22, 11
      %p141 = por %p139, %p140
      %p143 = scmp.ne.s32.totalorder %s128, %s142
      %p144 = scmp.eq.s32.totalorder %s22, 0
      %p145 = por %p143, %p144
      %s146 = ssub.s32 %s24, %s31
      %p147 = scmp.eq.s32.totalorder %s146, 0
      %s149 = sadd.s32 %s148, 1
      %s150 = scalar_select %p147, %s148, %s149
      %p153 = pneg %p147
      %p154 = scmp.eq.s32.totalorder %s16, 11
      %p155 = por %p153, %p154
      %p156 = scmp.ne.s32.totalorder %s148, %s151
      %p157 = scmp.eq.s32.totalorder %s16, 0
      %p158 = por %p156, %p157
      %p159 = scmp.ne.s32.totalorder %s148, %s151
      %p160 = scmp.eq.s32.totalorder %s21, 11
      %p161 = por %p159, %p160
      %p162 = scmp.ne.s32.totalorder %s151, %s152
      %p163 = scmp.eq.s32.totalorder %s21, 0
      %p164 = por %p162, %p163
      %p165 = scmp.ne.s32.totalorder %s151, %s152
      %p166 = scmp.eq.s32.totalorder %s22, 11
      %p167 = por %p165, %p166
      %p169 = scmp.ne.s32.totalorder %s152, %s168
      %p170 = scmp.eq.s32.totalorder %s22, 0
      %p171 = por %p169, %p170
      %s172 = ssub.s32 %s24, %s31
      %p173 = scmp.eq.s32.totalorder %s172, 0
      %s175 = sadd.s32 %s174, 1
      %s176 = scalar_select %p173, %s174, %s175
      %p179 = pneg %p173
      %p180 = scmp.eq.s32.totalorder %s16, 11
      %p181 = por %p179, %p180
      %p182 = scmp.ne.s32.totalorder %s174, %s177
      %p183 = scmp.eq.s32.totalorder %s16, 0
      %p184 = por %p182, %p183
      %p185 = scmp.ne.s32.totalorder %s174, %s177
      %p186 = scmp.eq.s32.totalorder %s21, 11
      %p187 = por %p185, %p186
      %p188 = scmp.ne.s32.totalorder %s177, %s178
      %p189 = scmp.eq.s32.totalorder %s21, 0
      %p190 = por %p188, %p189
      %p191 = scmp.ne.s32.totalorder %s177, %s178
      %p192 = scmp.eq.s32.totalorder %s22, 11
      %p193 = por %p191, %p192
      %p195 = scmp.ne.s32.totalorder %s178, %s194
      %p196 = scmp.eq.s32.totalorder %s22, 0
      %p197 = por %p195, %p196
      %s198 = ssub.s32 %s23, %s35
      %s199 = ssub.s32 %s24, %s31
      %s200 = sor.u32 %s198, %s199
      %p201 = scmp.eq.s32.totalorder %s200, 0
      %s203 = sadd.s32 %s202, 1
      %s204 = scalar_select %p201, %s202, %s203
      %p207 = pneg %p201
      %p208 = scmp.eq.s32.totalorder %s16, 11
      %p209 = por %p207, %p208
      %p210 = scmp.ne.s32.totalorder %s202, %s205
      %p211 = scmp.eq.s32.totalorder %s16, 0
      %p212 = por %p210, %p211
      %p213 = scmp.ne.s32.totalorder %s202, %s205
      %p214 = scmp.eq.s32.totalorder %s21, 11
      %p215 = por %p213, %p214
      %p216 = scmp.ne.s32.totalorder %s205, %s206
      %p217 = scmp.eq.s32.totalorder %s21, 0
      %p218 = por %p216, %p217
      %p219 = scmp.ne.s32.totalorder %s205, %s206
      %p220 = scmp.eq.s32.totalorder %s22, 11
      %p221 = por %p219, %p220
      %p223 = scmp.ne.s32.totalorder %s206, %s222
      %p224 = scmp.eq.s32.totalorder %s22, 0
      %p225 = por %p223, %p224
      %p226 = scmp.le.s32.totalorder 1, %s16
      %p227 = scmp.lt.s32.totalorder %s16, 13
      %p228 = pnand %p226, %p227
      %p229 = pneg %p228
      // Predicated region
      $region9: #{_bert_lm_head_2d.1} parent=5 // pred_check
        _
      $region10: #{_bert_lm_head_2d.1} parent=5 // pred_check_branch
        %231 = sbr.rel (%p228) target = $region12
      $region11: #{_bert_lm_head_2d.1} parent=5 // pred_region
        %s232 = ssub.s32 %s16, 1
        // Predicated region
        $region13: #{_bert_lm_head_2d.1} parent=11 // pred_check
          %p233 = pneg %p75
        $region14: #{_bert_lm_head_2d.1} parent=11 // pred_check_branch
          %235 = sbr.rel (%p233) target = $region16
        $region15: #{_bert_lm_head_2d.1} parent=11 // pred_region
          _
        $region16: #{_bert_lm_head_2d.1} parent=11 // pred_fallthru
          _
        // Predicated region
        $region17: #{_bert_lm_head_2d.1} parent=11 // pred_check
          %p236 = pneg %p96
        $region18: #{_bert_lm_head_2d.1} parent=11 // pred_check_branch
          %238 = sbr.rel (%p236) target = $region20
        $region19: #{_bert_lm_head_2d.1} parent=11 // pred_region
          _
        $region20: #{_bert_lm_head_2d.1} parent=11 // pred_fallthru
          _
        // Predicated region
        $region21: #{_bert_lm_head_2d.1} parent=11 // pred_check
          %p239 = pneg %p117
        $region22: #{_bert_lm_head_2d.1} parent=11 // pred_check_branch
          %241 = sbr.rel (%p239) target = $region24
        $region23: #{_bert_lm_head_2d.1} parent=11 // pred_region
          _
        $region24: #{_bert_lm_head_2d.1} parent=11 // pred_fallthru
          _
        // Predicated region
        $region25: #{_bert_lm_head_2d.1} parent=11 // pred_check
          %p242 = pneg %p138
        $region26: #{_bert_lm_head_2d.1} parent=11 // pred_check_branch
          %244 = sbr.rel (%p242) target = $region28
        $region27: #{_bert_lm_head_2d.1} parent=11 // pred_region
          _
        $region28: #{_bert_lm_head_2d.1} parent=11 // pred_fallthru
          _
      $region12: #{_bert_lm_head_2d.1} parent=5 // pred_fallthru
        _
      %p245 = scmp.lt.s32.totalorder %s16, 12
      // Predicated region
      $region29: #{_bert_lm_head_2d.1} parent=5 // pred_check
        %p246 = pneg %p245
      $region30: #{_bert_lm_head_2d.1} parent=5 // pred_check_branch
        %248 = sbr.rel (%p246) target = $region32
      $region31: #{_bert_lm_head_2d.1} parent=5 // pred_region
        // Predicated region
        $region33: #{_bert_lm_head_2d.1} parent=31 // pred_check
          %p249 = pneg %p48
        $region34: #{_bert_lm_head_2d.1} parent=31 // pred_check_branch
          %251 = sbr.rel (%p249) target = $region36
        $region35: #{_bert_lm_head_2d.1} parent=31 // pred_region
          %s252 = smul.u32 2, %s23
          %p253 = scmp.lt.s32.totalorder %s252, 5
          %s254 = scalar_select %p253, %s252, 5
          %s255 = smul.addr %s254, 4
          %s256 = scalar_lea.vmem %s0, %s255
          %s257 = smul.u32 2, %s23
        $region36: #{_bert_lm_head_2d.1} parent=31 // pred_fallthru
          _
        // Predicated region
        $region37: #{_bert_lm_head_2d.1} parent=31 // pred_check
          %p258 = pneg %p158
        $region38: #{_bert_lm_head_2d.1} parent=31 // pred_check_branch
          %260 = sbr.rel (%p258) target = $region40
        $region39: #{_bert_lm_head_2d.1} parent=31 // pred_region
          %s261 = sand.u32 %s148, 1
          %s262 = sand.u32 %s148, 1
          %s263 = smul.addr %s262, 16
          %s264 = scalar_lea.vmem [#allocation3], %s263
          %s265 = smul.addr %s24, 4
          %s266 = scalar_lea.vmem %s5, %s265
          // Predicated region
          $region41: #{_bert_lm_head_2d.1} parent=39 // pred_check
            _
          $region42: #{_bert_lm_head_2d.1} parent=39 // pred_check_branch
            %268 = sbr.rel (0) target = $region44
          $region43: #{_bert_lm_head_2d.1} parent=39 // pred_region
            // Predicated region
            $region45: #{_bert_lm_head_2d.1} parent=43 // pred_check
              _
            $region46: #{_bert_lm_head_2d.1} parent=43 // pred_check_branch
              %270 = sbr.rel target = $region48
            $region47: #{_bert_lm_head_2d.1} parent=43 // pred_region
              // Predicated region
              $region60: #{_bert_lm_head_2d.1} parent=47 // pred_check
                _
              $region61: #{_bert_lm_head_2d.1} parent=47 // pred_check_branch
                %292 = sbr.rel (0) target = $region63
              $region62: #{_bert_lm_head_2d.1} parent=47 // pred_region
                loop: start=0, step=1, limit=1
                $region64: #{_bert_lm_head_2d.1} parent=62 // loop_pre_header
                  _
                $region65: #{_bert_lm_head_2d.1} parent=62 // loop_header
                  %s294 = sphi 0, %s298
                  %p295 = scmp.ge.s32.totalorder %s294, 1
                  %s299 = sphi %s266, %s266
                  %s300 = sphi %s264, %s264
                $region66: #{_bert_lm_head_2d.1} parent=62 // loop_header_branch
                  %297 = sbr.rel (%p295) target = $region70
                $region67: #{_bert_lm_head_2d.1} parent=62 // loop_body
                  _
                $region68: #{_bert_lm_head_2d.1} parent=62 // loop_footer
                  %s298 = sadd.s32 1, %s294
                $region69: #{_bert_lm_head_2d.1} parent=62 // loop_footer_branch
                  %293 = sbr.rel target = $region65
                $region70: #{_bert_lm_head_2d.1} parent=62 // loop_exit
                  _
                %s302 = ssub.s32 16, 1
                loop: start=0, step=1, limit=1
                $region71: #{_bert_lm_head_2d.1} parent=62 // loop_pre_header
                  _
                $region72: #{_bert_lm_head_2d.1} parent=62 // loop_header
                  %s304 = sphi 0, %s308
                  %p305 = scmp.ge.s32.totalorder %s304, 1
                  %s309 = sphi %s266, %s266
                  %s310 = sphi %s264, %s264
                $region73: #{_bert_lm_head_2d.1} parent=62 // loop_header_branch
                  %307 = sbr.rel (%p305) target = $region77
                $region74: #{_bert_lm_head_2d.1} parent=62 // loop_body
                  %v311 = vld [vmem:[%s309] sm:%s302]
                  %312 = vst [vmem:[%s310] sm:%s302] %v311
                  %v313 = vld [vmem:[%s309 + $0x10] sm:%s302]
                  %314 = vst [vmem:[%s310 + $0x4] sm:%s302] %v313
                  %v315 = vld [vmem:[%s309 + $0x20] sm:%s302]
                  %316 = vst [vmem:[%s310 + $0x8] sm:%s302] %v315
                  %v317 = vld [vmem:[%s309 + $0x30] sm:%s302]
                  %318 = vst [vmem:[%s310 + $0xc] sm:%s302] %v317
                $region75: #{_bert_lm_head_2d.1} parent=62 // loop_footer
                  %s308 = sadd.s32 1, %s304
                $region76: #{_bert_lm_head_2d.1} parent=62 // loop_footer_branch
                  %303 = sbr.rel target = $region72
                $region77: #{_bert_lm_head_2d.1} parent=62 // loop_exit
                  _
              $region63: #{_bert_lm_head_2d.1} parent=47 // pred_fallthru
                _
            $region48: #{_bert_lm_head_2d.1} parent=43 // pred_fallthru
              _
            // Predicated region
            $region49: #{_bert_lm_head_2d.1} parent=43 // pred_check
              _
            $region50: #{_bert_lm_head_2d.1} parent=43 // pred_check_branch
              %272 = sbr.rel (0) target = $region52
            $region51: #{_bert_lm_head_2d.1} parent=43 // pred_region
              %s274 = ssub.s32 16, 1
              loop: start=0, step=1, limit=1
              $region53: #{_bert_lm_head_2d.1} parent=51 // loop_pre_header
                _
              $region54: #{_bert_lm_head_2d.1} parent=51 // loop_header
                %s276 = sphi 0, %s280
                %p277 = scmp.ge.s32.totalorder %s276, 1
                %s281 = sphi %s266, %s266
                %s282 = sphi %s264, %s264
              $region55: #{_bert_lm_head_2d.1} parent=51 // loop_header_branch
                %279 = sbr.rel (%p277) target = $region59
              $region56: #{_bert_lm_head_2d.1} parent=51 // loop_body
                %v283 = vld [vmem:[%s281] sm:%s274]
                %284 = vst [vmem:[%s282] sm:%s274] %v283
                %v285 = vld [vmem:[%s281 + $0x10] sm:%s274]
                %286 = vst [vmem:[%s282 + $0x4] sm:%s274] %v285
                %v287 = vld [vmem:[%s281 + $0x20] sm:%s274]
                %288 = vst [vmem:[%s282 + $0x8] sm:%s274] %v287
                %v289 = vld [vmem:[%s281 + $0x30] sm:%s274]
                %290 = vst [vmem:[%s282 + $0xc] sm:%s274] %v289
              $region57: #{_bert_lm_head_2d.1} parent=51 // loop_footer
                %s280 = sadd.s32 1, %s276
              $region58: #{_bert_lm_head_2d.1} parent=51 // loop_footer_branch
                %275 = sbr.rel target = $region54
              $region59: #{_bert_lm_head_2d.1} parent=51 // loop_exit
                _
            $region52: #{_bert_lm_head_2d.1} parent=43 // pred_fallthru
              _
          $region44: #{_bert_lm_head_2d.1} parent=39 // pred_fallthru
            _
          %319 = vnop
        $region40: #{_bert_lm_head_2d.1} parent=31 // pred_fallthru
          _
        // Predicated region
        $region78: #{_bert_lm_head_2d.1} parent=31 // pred_check
          %p320 = pneg %p184
        $region79: #{_bert_lm_head_2d.1} parent=31 // pred_check_branch
          %322 = sbr.rel (%p320) target = $region81
        $region80: #{_bert_lm_head_2d.1} parent=31 // pred_region
          %p323 = scmp.lt.s32.totalorder %s24, 3
          %s324 = scalar_select %p323, %s24, 3
          %s325 = scalar_lea.vmem %s6, %s324
        $region81: #{_bert_lm_head_2d.1} parent=31 // pred_fallthru
          _
      $region32: #{_bert_lm_head_2d.1} parent=5 // pred_fallthru
        _
      %p326 = scmp.le.s32.totalorder 1, %s16
      %p327 = scmp.lt.s32.totalorder %s16, 13
      %p328 = pnand %p326, %p327
      %p329 = pneg %p328
      // Predicated region
      $region82: #{_bert_lm_head_2d.1} parent=5 // pred_check
        _
      $region83: #{_bert_lm_head_2d.1} parent=5 // pred_check_branch
        %331 = sbr.rel (%p328) target = $region85
      $region84: #{_bert_lm_head_2d.1} parent=5 // pred_region
        %s332 = ssub.s32 %s16, 1
        %s333 = sand.u32 %s151, 1
        %s334 = sand.u32 %s151, 1
        %s335 = smul.addr %s334, 16
        %s336 = scalar_lea.vmem [#allocation3], %s335
        // Predicated region
        $region86: #{_bert_lm_head_2d.1} parent=84 // pred_check
          %p337 = pneg %p164
        $region87: #{_bert_lm_head_2d.1} parent=84 // pred_check_branch
          %339 = sbr.rel (%p337) target = $region89
        $region88: #{_bert_lm_head_2d.1} parent=84 // pred_region
          _
        $region89: #{_bert_lm_head_2d.1} parent=84 // pred_fallthru
          _
        %s340 = smul.u32 2, %s25
        %p341 = scmp.lt.s32.totalorder %s340, 5
        %s342 = scalar_select %p341, %s340, 5
        %s343 = smul.addr %s342, 4
        %s344 = scalar_lea.vmem %s0, %s343
        %p345 = pneg %p54
        %p346 = pneg %p51
        %p347 = pneg %p75
        %p348 = pneg %p72
        %p349 = pneg %p96
        %p350 = pneg %p93
        %p351 = pneg %p117
        %p352 = pneg %p114
        %p353 = pneg %p138
        %p354 = pneg %p135
        %s355 = sand.u32 %s151, 1
        %s356 = sand.u32 %s151, 1
        %s357 = smul.addr %s356, 16
        %s358 = scalar_lea.vmem [#allocation3], %s357
        %p359 = pneg %p164
        %p360 = pneg %p161
        %p361 = scmp.lt.s32.totalorder %s26, 3
        %s362 = scalar_select %p361, %s26, 3
        %s363 = scalar_lea.vmem %s6, %s362
        %p364 = pneg %p190
        %p365 = pneg %p187
        %p366 = pneg %p218
        %p367 = pneg %p215
        %s368 = sand.u32 %s205, 1
        %s369 = scalar_lea.sflag [#allocation5], %s368
        %s370 = sand.u32 %s205, 1
        %s371 = smul.addr %s370, 16
        %s372 = scalar_lea.vmem [#allocation4], %s371
        %s373 = smul.u32 2, %s25
        %p374 = scmp.lt.s32.totalorder %s373, 5
        %s375 = scalar_select %p374, %s373, 5
        %s376 = smul.addr %s375, 4
        %s377 = scalar_lea.vmem %s0, %s376
        %s378 = smul.u32 2, %s25
        %p379 = scmp.lt.s32.totalorder %s26, 3
        %s380 = scalar_select %p379, %s26, 3
        %s381 = scalar_lea.vmem %s6, %s380
        %s382 = smul.u32 2, %s25
        %p384 = scmp.eq.s32.totalorder %s26, 0
        // Predicated region
        $region90: #{_bert_lm_head_2d.1} parent=84 // pred_check
          %p385 = pneg %p384
        $region91: #{_bert_lm_head_2d.1} parent=84 // pred_check_branch
          %387 = sbr.rel (%p385) target = $region93
        $region92: #{_bert_lm_head_2d.1} parent=84 // pred_region
          %v388 = vld [vmem:[%s377] sm:$0xf]
          %v389 = vld [vmem:[%s377 + $0x4] sm:$0xf]
          %v390 = vld [vmem:[%s1] sm:$0xf]
          %v391 = vld [vmem:[%s1 + $0x4] sm:$0xf]
          %v392 = vld [vmem:[%s1 + $0x8] sm:$0xf]
          %v393 = vld [vmem:[%s1 + $0xc] sm:$0xf]
          %v394 = vld [vmem:[%s2] sm:$0x1]
          %v396 = vlaneseq
          %v397 = vshrl.u32 %v396, 7
          %v398 = vsub.s32 0, %v397
          %v399 = vrot.slane %v394, %v398
          %v403 = vunpack.c.l.b16 %v388
          %v404 = vunpack.c.l.b16 %v389
          %v405 = vpack.c.b16 %v404, %v403
          %v410 = vunpack.c.l.b16 %v390
          %v411 = vunpack.c.l.b16 %v391
          %v412 = vunpack.c.l.b16 %v392
          %v413 = vunpack.c.l.b16 %v393
          %v414 = vpack.c.b16 %v411, %v410
          %v415 = vpack.c.b16 %v413, %v412
          %vm418 = vcmask 261120
          %v420 = vsel %vm418, %v405, 0
          %422 = vmatprep.subr.bf16.mxu0 0
          %423 = vmatpush1.bf16.msra.mxu0 0
          %424 = vmatprep.subr.bf16.mxu0 0
          %425 = vmatpush1.bf16.msra.mxu0 0
          %426 = vmatprep.subr.bf16.mxu0 0
          %427 = vmatpush1.bf16.msra.mxu0 0
          %428 = vmatprep.subr.bf16.mxu0 0
          %429 = vmatpush1.bf16.msra.mxu0 0
          %430 = vmatprep.subr.bf16.mxu0 0
          %431 = vmatpush1.bf16.msra.mxu0 0
          %432 = vmatprep.subr.bf16.mxu0 0
          %433 = vmatpush1.bf16.msra.mxu0 0
          %434 = vmatprep.subr.bf16.mxu0 0
          %435 = vmatpush1.bf16.msra.mxu0 %v415
          %436 = vmatprep.subr.bf16.mxu0 0
          %437 = vmatpush1.bf16.msra.mxu0 %v414
          %438 = vmatprep.subr.bf16.mxu0 0
          %439 = vmatpush2.bf16.msra.mxu0 0
          %440 = vmatprep.subr.bf16.mxu0 0
          %441 = vmatpush2.bf16.msra.mxu0 0
          %442 = vmatprep.subr.bf16.mxu0 0
          %443 = vmatpush2.bf16.msra.mxu0 0
          %444 = vmatprep.subr.bf16.mxu0 0
          %445 = vmatpush2.bf16.msra.mxu0 0
          %446 = vmatprep.subr.bf16.mxu0 0
          %447 = vmatpush2.bf16.msra.mxu0 0
          %448 = vmatprep.subr.bf16.mxu0 0
          %449 = vmatpush2.bf16.msra.mxu0 0
          %450 = vmatprep.subr.bf16.mxu0 0
          %451 = vmatpush2.bf16.msra.mxu0 0
          %452 = vmatprep.subr.bf16.mxu0 0
          %453 = vmatpush2.bf16.msra.mxu0 0
          %454 = vmatprep.mubr.bf16.mxu0 0
          %455 = vmatmul.mubr.bf16.gmra.mxu0 %v420
          %v456 = vpop.f32.mrf.mxu0
          %v457 = vadd.f32 %v399, %v456
          %v458 = vpop.f32.mrf.mxu0
          %v459 = vpop.f32.mrf.mxu0
          %v460 = vadd.f32 %v399, %v459
          %v461 = vpop.f32.mrf.mxu0
          %462 = vdwg.mxu0
          %v463 = vmul.f32 %v457, %v457
          %v464 = vmul.f32 %v460, %v460
          %v465 = vmul.f32 %v457, %v463
          %v466 = vmul.f32 %v460, %v464
          %v467 = vmul.f32 %v465, 0.044715
          %v468 = vmul.f32 %v466, 0.044715
          %v469 = vadd.f32 %v457, %v467
          %v470 = vadd.f32 %v460, %v468
          %v471 = vmul.f32 %v469, 0.7978846
          %v472 = vmul.f32 %v470, 0.7978846
          %v473 = vtanh.pop %v471
          %v474 = vtanh.pop %v472
          %v475 = vadd.f32 %v473, 1.0
          %v476 = vadd.f32 %v474, 1.0
          %v477 = vmul.f32 %v475, 0.5
          %v478 = vmul.f32 %v476, 0.5
          %v479 = vmul.f32 %v457, %v477
          %v480 = vmul.f32 %v460, %v478
          %v481 = vsel %vm418, %v479, 0.0
          %482 = vadd.xlane.f32.xlu0 %v481
          %v483 = vpop.xlane.xlu0 %482
          %v484 = vsel %vm418, %v480, 0.0
          %485 = vadd.xlane.f32.xlu0 %v484
          %v486 = vpop.xlane.xlu0 %485
          %v487 = vrcp.pop 32.0
          %v488 = vmul.f32 %v483, %v487
          %v489 = vmul.f32 %v486, %v487
          %v490 = vmul.f32 %v479, %v479
          %v491 = vmul.f32 %v480, %v480
          %v492 = vsel %vm418, %v490, 0.0
          %493 = vadd.xlane.f32.xlu0 %v492
          %v494 = vpop.xlane.xlu0 %493
          %v495 = vsel %vm418, %v491, 0.0
          %496 = vadd.xlane.f32.xlu0 %v495
          %v497 = vpop.xlane.xlu0 %496
          %v498 = vmul.f32 %v494, %v487
          %v499 = vmul.f32 %v497, %v487
          %v500 = vmul.f32 %v488, %v488
          %v501 = vmul.f32 %v489, %v489
          %v502 = vsub.f32 %v498, %v500
          %v503 = vsub.f32 %v499, %v501
          %v504 = vsub.f32 %v479, %v488
          %v505 = vsub.f32 %v480, %v489
          %v506 = vadd.f32 %v502, 1e-12
          %v507 = vadd.f32 %v503, 1e-12
          %v508 = vrsqrt.pop %v506
          %v509 = vrsqrt.pop %v507
          %v510 = vmul.f32 %v504, %v508
          %v511 = vmul.f32 %v505, %v509
          %v512 = vld [vmem:[%s3] sm:$0x1]
          %v514 = vlaneseq
          %v515 = vshrl.u32 %v514, 7
          %v516 = vsub.s32 0, %v515
          %v517 = vrot.slane %v512, %v516
          %v519 = vmul.f32 %v510, %v517
          %v520 = vmul.f32 %v511, %v517
          %v521 = vld [vmem:[%s4] sm:$0x1]
          %v523 = vlaneseq
          %v524 = vshrl.u32 %v523, 7
          %v525 = vsub.s32 0, %v524
          %v526 = vrot.slane %v521, %v525
          %v528 = vadd.f32 %v519, %v526
          %v529 = vadd.f32 %v520, %v526
          %v530 = vpack.c.bf16 %v529, %v528
          %v532 = vunpack.c.l.b16 %v530
          %v533 = vunpack.c.h.b16 %v530
          %v534 = vpack.c.b16 %v532, %v532
          %v535 = vpack.c.b16 %v533, %v533
          %vm538 = vcmask 257024
          %539 = vst.msk [vmem:[#allocation2] sm:$0xf] %vm538, %v534
          %540 = vst.msk [vmem:[#allocation2 + $0x4] sm:$0xf] %vm538, %v535
        $region93: #{_bert_lm_head_2d.1} parent=84 // pred_fallthru
          _
        %v541 = vld [vmem:[#allocation2] sm:$0xf]
        %v542 = vld [vmem:[#allocation2 + $0x4] sm:$0xf]
        %v543 = vld [vmem:[%s336] sm:$0xf]
        %v544 = vld [vmem:[%s336 + $0x4] sm:$0xf]
        %v545 = vld [vmem:[%s336 + $0x8] sm:$0xf]
        %v546 = vld [vmem:[%s336 + $0xc] sm:$0xf]
        %v547 = vld [vmem:[%s381] sm:$0x1]
        %v549 = vlaneseq
        %v550 = vshrl.u32 %v549, 7
        %v551 = vsub.s32 0, %v550
        %v552 = vrot.slane %v547, %v551
        %v556 = vunpack.c.l.b16 %v541
        %v557 = vunpack.c.l.b16 %v542
        %v558 = vpack.c.b16 %v557, %v556
        %v563 = vunpack.c.l.b16 %v543
        %v564 = vunpack.c.l.b16 %v544
        %v565 = vunpack.c.l.b16 %v545
        %v566 = vunpack.c.l.b16 %v546
        %v567 = vpack.c.b16 %v564, %v563
        %v568 = vpack.c.b16 %v566, %v565
        %vm571 = vcmask 261120
        %v573 = vsel %vm571, %v558, 0
        %575 = vmatprep.subr.bf16.mxu0 0
        %576 = vmatpush1.bf16.msra.mxu0 0
        %577 = vmatprep.subr.bf16.mxu0 0
        %578 = vmatpush1.bf16.msra.mxu0 0
        %579 = vmatprep.subr.bf16.mxu0 0
        %580 = vmatpush1.bf16.msra.mxu0 0
        %581 = vmatprep.subr.bf16.mxu0 0
        %582 = vmatpush1.bf16.msra.mxu0 0
        %583 = vmatprep.subr.bf16.mxu0 0
        %584 = vmatpush1.bf16.msra.mxu0 0
        %585 = vmatprep.subr.bf16.mxu0 0
        %586 = vmatpush1.bf16.msra.mxu0 0
        %587 = vmatprep.subr.bf16.mxu0 0
        %588 = vmatpush1.bf16.msra.mxu0 %v568
        %589 = vmatprep.subr.bf16.mxu0 0
        %590 = vmatpush1.bf16.msra.mxu0 %v567
        %591 = vmatprep.subr.bf16.mxu0 0
        %592 = vmatpush2.bf16.msra.mxu0 0
        %593 = vmatprep.subr.bf16.mxu0 0
        %594 = vmatpush2.bf16.msra.mxu0 0
        %595 = vmatprep.subr.bf16.mxu0 0
        %596 = vmatpush2.bf16.msra.mxu0 0
        %597 = vmatprep.subr.bf16.mxu0 0
        %598 = vmatpush2.bf16.msra.mxu0 0
        %599 = vmatprep.subr.bf16.mxu0 0
        %600 = vmatpush2.bf16.msra.mxu0 0
        %601 = vmatprep.subr.bf16.mxu0 0
        %602 = vmatpush2.bf16.msra.mxu0 0
        %603 = vmatprep.subr.bf16.mxu0 0
        %604 = vmatpush2.bf16.msra.mxu0 0
        %605 = vmatprep.subr.bf16.mxu0 0
        %606 = vmatpush2.bf16.msra.mxu0 0
        %607 = vmatprep.mubr.bf16.mxu0 0
        %608 = vmatmul.mubr.bf16.gmra.mxu0 %v573
        %v609 = vpop.f32.mrf.mxu0
        %v610 = vadd.f32 %v552, %v609
        %v611 = vpop.f32.mrf.mxu0
        %v612 = vpop.f32.mrf.mxu0
        %v613 = vadd.f32 %v552, %v612
        %v614 = vpop.f32.mrf.mxu0
        %615 = vdwg.mxu0
        %616 = vst [vmem:[%s372] sm:$0xff] %v610
        %617 = vst [vmem:[%s372 + $0x8] sm:$0xff] %v613
        %s618 = sand.u32 %s205, 1
        %s619 = scalar_lea.sflag [#allocation5], %s618
        %s620 = sand.u32 %s205, 1
        %s621 = smul.addr %s620, 16
        %s622 = scalar_lea.vmem [#allocation4], %s621
        // Predicated region
        $region94: #{_bert_lm_head_2d.1} parent=84 // pred_check
          %p623 = pneg %p215
        $region95: #{_bert_lm_head_2d.1} parent=84 // pred_check_branch
          %625 = sbr.rel (%p623) target = $region97
        $region96: #{_bert_lm_head_2d.1} parent=84 // pred_region
          %s626 = smul.u32 2, %s25
          %s628 = ssub.s32 256, 256
          %629 = vsyncadd %s619, %s628
          %s630 = smul.addr %s626, 4
          %s631 = sadd.s32 %s26, %s630
          %s632 = smul.addr %s631, 128
          %s633 = scalar_lea.hbm %s7, %s632
          %s634 = sshll.u32 %s622, 4
          %s635 = int_to_ptr.vmem [resolvable:$true] %s634
          %640 = dma.vmem_to_hbm [thread:$0]  %s635, 256, %s633, %s619, 128, 512, 8
        $region97: #{_bert_lm_head_2d.1} parent=84 // pred_fallthru
          _
      $region85: #{_bert_lm_head_2d.1} parent=5 // pred_fallthru
        _
      %p641 = scmp.le.s32.totalorder 2, %s16
      // Predicated region
      $region98: #{_bert_lm_head_2d.1} parent=5 // pred_check
        %p642 = pneg %p641
      $region99: #{_bert_lm_head_2d.1} parent=5 // pred_check_branch
        %644 = sbr.rel (%p642) target = $region101
      $region100: #{_bert_lm_head_2d.1} parent=5 // pred_region
        %s645 = ssub.s32 %s16, 2
        // Predicated region
        $region102: #{_bert_lm_head_2d.1} parent=100 // pred_check
          %p646 = pneg %p221
        $region103: #{_bert_lm_head_2d.1} parent=100 // pred_check_branch
          %648 = sbr.rel (%p646) target = $region105
        $region104: #{_bert_lm_head_2d.1} parent=100 // pred_region
          %s649 = sand.u32 %s206, 1
          %s650 = scalar_lea.sflag [#allocation5], %s649
          %s651 = sand.u32 %s206, 1
          %s652 = smul.addr %s651, 16
          %s653 = scalar_lea.vmem [#allocation4], %s652
          %654 = dma.done %s650, 256
        $region105: #{_bert_lm_head_2d.1} parent=100 // pred_fallthru
          _
      $region101: #{_bert_lm_head_2d.1} parent=5 // pred_fallthru
        _
    $region6: #{_bert_lm_head_2d.1} parent=1 // loop_footer
      %s20 = sadd.s32 1, %s16
    $region7: #{_bert_lm_head_2d.1} parent=1 // loop_footer_branch
      %15 = sbr.rel target = $region3
    $region8: #{_bert_lm_head_2d.1} parent=1 // loop_exit
      _
    %655 = vsyncpa [#allocation5], 1
    %s656 = scalar_lea.sflag [#allocation5], 1
    %657 = vsyncpa %s656, 1

</llo_original>
